<compile_context>
chip_gen: v7x
topology: tpu7x:2x2x1
jax: 0.10.0
libtpu: 0.0.40
codegen_flags: <defaults>
</compile_context>

<pallas_src>
import functools

import jax
import jax.numpy as jnp
from jax import lax
from jax.experimental import pallas as pl
from jax.experimental.pallas import tpu as pltpu


def _lsce_kernel(preds_ref, tgt_ref, loss_ref, *, epsilon, num_classes):
    """Fused per-row label-smoothing CE for one batch tile.

    preds_ref : (TM, C) logits (input dtype)
    tgt_ref   : (TM, 1) int32 targets
    loss_ref  : (TM, 1) f32 fused per-row loss
    """
    x = preds_ref[...].astype(jnp.float32)                            # (TM, C)

    # Numerically stable log-sum-exp per row.
    m = jnp.max(x, axis=-1, keepdims=True)                            # (TM, 1)
    lse = jnp.log(jnp.sum(jnp.exp(x - m), axis=-1, keepdims=True)) + m

    # sum_c x (for -sum_c logp = C*lse - sum_x) — no (TM, C) logp tensor.
    sum_x = jnp.sum(x, axis=-1, keepdims=True)                        # (TM, 1)

    # x[target] via one-hot compare + lane reduction.
    col = lax.broadcasted_iota(jnp.int32, x.shape, 1)                 # (TM, C)
    tgt = tgt_ref[...]                                                # (TM, 1)
    picked_x = jnp.sum(jnp.where(col == tgt, x, 0.0),
                       axis=-1, keepdims=True)                        # (TM, 1)

    # eps * (C*lse - sum_x)/C + (1-eps) * (lse - picked_x)
    #   == lse - (eps/C) * sum_x - (1-eps) * picked_x
    eps_over_c = jnp.float32(epsilon / num_classes)
    one_minus_eps = jnp.float32(1.0 - epsilon)
    loss_ref[...] = lse - eps_over_c * sum_x - one_minus_eps * picked_x


def _round_up(x, m):
    return ((x + m - 1) // m) * m


def _round_down(x, m):
    return (x // m) * m


def _choose_tile(n_rows, n_classes, in_itemsize):
    """Pick the batch tile TM by block bytes, bounded by the VMEM budget."""
    try:
        vmem_cap = int(pltpu.get_tpu_info().vmem_capacity_bytes)
    except Exception:  # pragma: no cover - conservative fallback
        vmem_cap = 64 * 1024 * 1024
    small_vmem = vmem_cap <= 64 * 1024 * 1024  # v7x-like: 64 MiB VMEM, 2 TCs
    # Leave ~25% headroom below physical capacity.
    vmem_limit = int(vmem_cap * 3 // 4)

    # Per-row VMEM cost: double-buffered input block (original dtype) plus
    # ~6 C-wide f32 in-kernel temporaries (f32 cast, x-m, exp, iota,
    # mask/select) plus small per-row outputs / targets.
    per_row = 2 * n_classes * in_itemsize + 6 * n_classes * 4 + 64
    tm_vmem = vmem_limit // per_row

    # Size the input block in bytes (pipelining sweet spot): ~3 MiB on
    # small-VMEM chips, ~6 MiB otherwise.
    target_block_bytes = (3 if small_vmem else 6) * 1024 * 1024
    tm_bytes = target_block_bytes // max(1, n_classes * in_itemsize)

    tm = min(tm_vmem, tm_bytes)
    if small_vmem:
        # Guarantee >= 2 grid blocks so both TensorCores get work.
        tm = min(tm, _round_up(pl.cdiv(n_rows, 2), 8))
    tm = max(8, _round_down(tm, 8))
    # Never exceed the (8-rounded-down) row count: keeps the block no larger
    # than the array in the sublane dim (the tail is a standard partial block).
    tm = min(tm, max(8, _round_down(n_rows, 8)))
    return tm, vmem_limit


@functools.partial(jax.jit, static_argnames=("epsilon", "reduction"))
def label_smoothing_cross_entropy(preds, target, epsilon=0.1, reduction="mean"):
    """Forward pass of LabelSmoothingCrossEntropy.

    preds:  (N, C) float (any float dtype; bf16 is passed through un-upcast)
    target: (N,)   int
    Returns a scalar for 'mean'/'sum', a (N,) vector for 'none'.
    """
    N, C = preds.shape
    in_itemsize = jnp.dtype(preds.dtype).itemsize

    tgt = target.astype(jnp.int32).reshape(N, 1)
    preds_in = preds  # keep original dtype: halves HBM traffic for bf16 logits
    n_rows = N
    if N < 8:
        # Tiny-batch guard: pad rows to the 8-sublane minimum (negligible
        # cost) so no block ever exceeds the array extent.
        pad = 8 - N
        preds_in = jnp.pad(preds_in, ((0, pad), (0, 0)))
        tgt = jnp.pad(tgt, ((0, pad), (0, 0)))
        n_rows = 8

    TM, vmem_limit = _choose_tile(n_rows, C, in_itemsize)
    num_blocks = pl.cdiv(n_rows, TM)

    cost = pl.CostEstimate(
        flops=6 * n_rows * C,
        transcendentals=n_rows * C,
        bytes_accessed=n_rows * C * in_itemsize + n_rows * 4 + n_rows * 4,
    )

    kernel = functools.partial(_lsce_kernel,
                               epsilon=float(epsilon), num_classes=C)

    loss_rows = pl.pallas_call(
        kernel,
        out_shape=jax.ShapeDtypeStruct((n_rows, 1), jnp.float32),
        grid_spec=pltpu.PrefetchScalarGridSpec(
            num_scalar_prefetch=0,
            grid=(num_blocks,),
            in_specs=[
                pl.BlockSpec((TM, C), lambda i: (i, 0)),
                pl.BlockSpec((TM, 1), lambda i: (i, 0)),
            ],
            out_specs=pl.BlockSpec((TM, 1), lambda i: (i, 0)),
        ),
        compiler_params=pltpu.CompilerParams(
            dimension_semantics=("parallel",),
            vmem_limit_bytes=vmem_limit,
        ),
        cost_estimate=cost,
    )(preds_in, tgt)

    loss_rows = loss_rows[:N, 0]

    if reduction == "mean":
        return jnp.mean(loss_rows)
    if reduction == "sum":
        return jnp.sum(loss_rows)
    return loss_rows  # 'none' -> per-element, matching the PyTorch module


def _reference(preds, target, epsilon=0.1, reduction="mean"):
    logp = jax.nn.log_softmax(preds.astype(jnp.float32), axis=-1)
    loss = -jnp.sum(logp, axis=-1)
    nll = -jnp.take_along_axis(logp, target[:, None], axis=-1)[:, 0]
    if reduction == "mean":
        loss, nll = jnp.mean(loss), jnp.mean(nll)
    elif reduction == "sum":
        loss, nll = jnp.sum(loss), jnp.sum(nll)
    n = preds.shape[-1]
    return epsilon * (loss / n) + (1.0 - epsilon) * nll


if __name__ == "__main__":
    key = jax.random.PRNGKey(0)
    k1, k2, k3, k4, k5, k6 = jax.random.split(key, 6)

    # Case 1: small f32 batch, divisible shapes, mean reduction.
    N, C = 16, 32
    preds = jax.random.normal(k1, (N, C), dtype=jnp.float32)
    target = jax.random.randint(k2, (N,), 0, C, dtype=jnp.int32)
    out = label_smoothing_cross_entropy(preds, target, epsilon=0.1,
                                        reduction="mean")
    out = jax.block_until_ready(out)
    ref = _reference(preds, target, epsilon=0.1, reduction="mean")
    assert jnp.allclose(out, ref, rtol=1e-5, atol=1e-5), (out, ref)

    # Case 2: bf16 logits, N not a multiple of 8 -> exercises the un-padded
    # partial-last-block path (garbage tail rows masked on write-back).
    N2, C2 = 13, 40
    preds2 = jax.random.normal(k3, (N2, C2),
                               dtype=jnp.float32).astype(jnp.bfloat16)
    target2 = jax.random.randint(k4, (N2,), 0, C2, dtype=jnp.int32)
    out2 = label_smoothing_cross_entropy(preds2, target2, epsilon=0.1,
                                         reduction="sum")
    out2 = jax.block_until_ready(out2)
    ref2 = _reference(preds2, target2, epsilon=0.1, reduction="sum")
    assert jnp.allclose(out2, ref2, rtol=1e-4, atol=1e-4), (out2, ref2)

    # Case 3: 'none' reduction (per-element), and the tiny-batch (N < 8) path.
    N3, C3 = 5, 24
    preds3 = jax.random.normal(k5, (N3, C3), dtype=jnp.float32)
    target3 = jax.random.randint(k6, (N3,), 0, C3, dtype=jnp.int32)
    out3 = label_smoothing_cross_entropy(preds3, target3, epsilon=0.2,
                                         reduction="none")
    out3 = jax.block_until_ready(out3)
    ref3 = _reference(preds3, target3, epsilon=0.2, reduction="none")
    assert out3.shape == (N3,)
    assert jnp.allclose(out3, ref3, rtol=1e-5, atol=1e-5), (out3, ref3)

    print("KERNEL_OK")
</pallas_src>

<mosaic_0001>
module attributes {stable_mosaic.version = 11 : i64} {
  func.func @_lsce_kernel(%arg0: i32, %arg1: memref<8x32xf32, #tpu.memory_space<vmem>>, %arg2: memref<8x1xi32, #tpu.memory_space<vmem>>, %arg3: memref<8x1xf32, #tpu.memory_space<vmem>>) attributes {dimension_semantics = [#tpu.dimension_semantics<parallel>], iteration_bounds = array<i64: 2>, scalar_prefetch = 0 : i64, scratch_operands = 0 : i64, tpu.core_type = #tpu.core_type<tc>, window_params = [{transform_indices = @transform_0, window_bounds = array<i64: 8, 32>}, {transform_indices = @transform_1, window_bounds = array<i64: 8, 1>}, {transform_indices = @transform_2, window_bounds = array<i64: 8, 1>}]} {
    %c0 = arith.constant 0 : index
    %c0_0 = arith.constant 0 : index
    %0 = vector.load %arg1[%c0, %c0_0] : memref<8x32xf32, #tpu.memory_space<vmem>>, vector<8x32xf32>
    %cst = arith.constant dense<0xFF800000> : vector<8xf32>
    %1 = vector.multi_reduction <maximumf>, %0, %cst [1] : vector<8x32xf32> to vector<8xf32>
    %2 = vector.shape_cast %1 : vector<8xf32> to vector<8x1xf32>
    %3 = vector.broadcast %2 : vector<8x1xf32> to vector<8x32xf32>
    %4 = arith.subf %0, %3 : vector<8x32xf32>
    %5 = math.exp %4 : vector<8x32xf32>
    %cst_1 = arith.constant dense<0.000000e+00> : vector<8xf32>
    %6 = vector.multi_reduction <add>, %5, %cst_1 [1] : vector<8x32xf32> to vector<8xf32>
    %7 = vector.shape_cast %6 : vector<8xf32> to vector<8x1xf32>
    %8 = math.log %7 : vector<8x1xf32>
    %9 = arith.addf %8, %2 : vector<8x1xf32>
    %cst_2 = arith.constant dense<0.000000e+00> : vector<8xf32>
    %10 = vector.multi_reduction <add>, %0, %cst_2 [1] : vector<8x32xf32> to vector<8xf32>
    %11 = vector.shape_cast %10 : vector<8xf32> to vector<8x1xf32>
    %12 = tpu.iota {dimensions = array<i32: 1>} : vector<8x32xi32>
    %c0_3 = arith.constant 0 : index
    %c0_4 = arith.constant 0 : index
    %13 = vector.load %arg2[%c0_3, %c0_4] : memref<8x1xi32, #tpu.memory_space<vmem>>, vector<8x1xi32>
    %14 = vector.broadcast %13 : vector<8x1xi32> to vector<8x32xi32>
    %15 = arith.cmpi eq, %12, %14 : vector<8x32xi32>
    %cst_5 = arith.constant 0.000000e+00 : f32
    %16 = vector.broadcast %cst_5 : f32 to vector<8x32xf32>
    %17 = arith.select %15, %0, %16 : vector<8x32xi1>, vector<8x32xf32>
    %cst_6 = arith.constant dense<0.000000e+00> : vector<8xf32>
    %18 = vector.multi_reduction <add>, %17, %cst_6 [1] : vector<8x32xf32> to vector<8xf32>
    %19 = vector.shape_cast %18 : vector<8xf32> to vector<8x1xf32>
    %cst_7 = arith.constant 3.125000e-03 : f32
    %20 = vector.broadcast %cst_7 : f32 to vector<8x1xf32>
    %21 = arith.mulf %20, %11 : vector<8x1xf32>
    %22 = arith.subf %9, %21 : vector<8x1xf32>
    %cst_8 = arith.constant 0.899999976 : f32
    %23 = vector.broadcast %cst_8 : f32 to vector<8x1xf32>
    %24 = arith.mulf %23, %19 : vector<8x1xf32>
    %25 = arith.subf %22, %24 : vector<8x1xf32>
    %c0_9 = arith.constant 0 : index
    %c0_10 = arith.constant 0 : index
    %26 = vector.load %arg3[%c0_9, %c0_10] : memref<8x1xf32, #tpu.memory_space<vmem>>, vector<8x1xf32>
    tpu.vector_store %arg3[%c0_9, %c0_10], %25 {strides = array<i32>} : memref<8x1xf32, #tpu.memory_space<vmem>>, vector<8x1xf32>,
    return
  }
  func.func @transform_0(%arg0: i32) -> (i32, i32) {
    %c0_i32 = arith.constant 0 : i32
    %c0_i32_0 = arith.constant 0 : i32
    return %arg0, %c0_i32 : i32, i32
  }
  func.func @transform_1(%arg0: i32) -> (i32, i32) {
    %c0_i32 = arith.constant 0 : i32
    %c0_i32_0 = arith.constant 0 : i32
    return %arg0, %c0_i32 : i32, i32
  }
  func.func @transform_2(%arg0: i32) -> (i32, i32) {
    %c0_i32 = arith.constant 0 : i32
    %c0_i32_0 = arith.constant 0 : i32
    return %arg0, %c0_i32 : i32, i32
  }
}

</mosaic_0001>

<llo_original>
// kernel: label_smoothing_cross_entropy.1
$region0: #{label_smoothing_cross_entropy.1}
  #allocation0 [shape = 'u32[]', space=smem, size = 0x4, offset = 0x4, fixed_abs, tag = 'smem constant byte address 0x4 - core index']
  #allocation1 [shape = 'u32[144,128]{1,0:T(1,128)}', space=vmem, size = 0x12000, scoped, tag = 'internal scratch']
  %s0 = inlined_call_operand.vmem [shape: f32[16,32], index: 0, kind: input, shape index: {}]
  %s1 = inlined_call_operand.vmem [shape: s32[16,1], index: 1, kind: input, shape index: {}]
  %s2 = inlined_call_operand.vmem [shape: f32[16,1], index: 2, kind: output, shape index: {}]
  %s3 = sld [smem:[#allocation0]]
  $region41: #{label_smoothing_cross_entropy.1} parent=0
    _
  %s5 = ssub.s32 1, %s3
  %s6 = scalar_select 0, %s5, %s3
  loop: start=0, step=1, limit=4
  $region2: #{label_smoothing_cross_entropy.1} parent=0 // loop_pre_header
    _
  $region3: #{label_smoothing_cross_entropy.1} parent=0 // loop_header
    %s8 = sphi 0, %s12
    %p9 = scmp.ge.s32.totalorder %s8, 4
    %s18 = sphi 0, %s20
    %s21 = sphi 0, %s18
    %s22 = sphi 0, %s21
    %s38 = sphi 0, %s22
    %s44 = sphi 0, %s46
    %s47 = sphi 0, %s44
    %s48 = sphi 0, %s47
    %s64 = sphi 0, %s48
    %s70 = sphi 0, %s72
    %s73 = sphi 0, %s70
    %s74 = sphi 0, %s73
    %s90 = sphi 0, %s74
  $region4: #{label_smoothing_cross_entropy.1} parent=0 // loop_header_branch
    %11 = sbr.rel (%p9) target = $region8
  $region5: #{label_smoothing_cross_entropy.1} parent=0 // loop_body
    %s13 = ssub.s32 %s8, 1
    %s14 = ssub.s32 %s8, 2
    %s15 = sadd.s32 %s8, 1
    %s16 = ssub.s32 %s8, %s15
    %p17 = scmp.eq.s32.totalorder %s16, 0
    %s19 = sadd.s32 %s18, 1
    %s20 = scalar_select %p17, %s18, %s19
    %p23 = pneg %p17
    %p24 = scmp.eq.s32.totalorder %s8, 1
    %p25 = por %p23, %p24
    %p26 = scmp.ne.s32.totalorder %s18, %s21
    %p27 = scmp.eq.s32.totalorder %s8, 0
    %p28 = por %p26, %p27
    %p29 = scmp.ne.s32.totalorder %s18, %s21
    %p30 = scmp.eq.s32.totalorder %s13, 1
    %p31 = por %p29, %p30
    %p32 = scmp.ne.s32.totalorder %s21, %s22
    %p33 = scmp.eq.s32.totalorder %s13, 0
    %p34 = por %p32, %p33
    %p35 = scmp.ne.s32.totalorder %s21, %s22
    %p36 = scmp.eq.s32.totalorder %s14, 1
    %p37 = por %p35, %p36
    %p39 = scmp.ne.s32.totalorder %s22, %s38
    %p40 = scmp.eq.s32.totalorder %s14, 0
    %p41 = por %p39, %p40
    %s42 = ssub.s32 %s8, %s15
    %p43 = scmp.eq.s32.totalorder %s42, 0
    %s45 = sadd.s32 %s44, 1
    %s46 = scalar_select %p43, %s44, %s45
    %p49 = pneg %p43
    %p50 = scmp.eq.s32.totalorder %s8, 1
    %p51 = por %p49, %p50
    %p52 = scmp.ne.s32.totalorder %s44, %s47
    %p53 = scmp.eq.s32.totalorder %s8, 0
    %p54 = por %p52, %p53
    %p55 = scmp.ne.s32.totalorder %s44, %s47
    %p56 = scmp.eq.s32.totalorder %s13, 1
    %p57 = por %p55, %p56
    %p58 = scmp.ne.s32.totalorder %s47, %s48
    %p59 = scmp.eq.s32.totalorder %s13, 0
    %p60 = por %p58, %p59
    %p61 = scmp.ne.s32.totalorder %s47, %s48
    %p62 = scmp.eq.s32.totalorder %s14, 1
    %p63 = por %p61, %p62
    %p65 = scmp.ne.s32.totalorder %s48, %s64
    %p66 = scmp.eq.s32.totalorder %s14, 0
    %p67 = por %p65, %p66
    %s68 = ssub.s32 %s8, %s15
    %p69 = scmp.eq.s32.totalorder %s68, 0
    %s71 = sadd.s32 %s70, 1
    %s72 = scalar_select %p69, %s70, %s71
    %p75 = pneg %p69
    %p76 = scmp.eq.s32.totalorder %s8, 1
    %p77 = por %p75, %p76
    %p78 = scmp.ne.s32.totalorder %s70, %s73
    %p79 = scmp.eq.s32.totalorder %s8, 0
    %p80 = por %p78, %p79
    %p81 = scmp.ne.s32.totalorder %s70, %s73
    %p82 = scmp.eq.s32.totalorder %s13, 1
    %p83 = por %p81, %p82
    %p84 = scmp.ne.s32.totalorder %s73, %s74
    %p85 = scmp.eq.s32.totalorder %s13, 0
    %p86 = por %p84, %p85
    %p87 = scmp.ne.s32.totalorder %s73, %s74
    %p88 = scmp.eq.s32.totalorder %s14, 1
    %p89 = por %p87, %p88
    %p91 = scmp.ne.s32.totalorder %s74, %s90
    %p92 = scmp.eq.s32.totalorder %s14, 0
    %p93 = por %p91, %p92
    %p94 = scmp.le.s32.totalorder 1, %s8
    %p95 = scmp.lt.s32.totalorder %s8, 3
    %p96 = pnand %p94, %p95
    %p97 = pneg %p96
    // Predicated region
    $region9: #{label_smoothing_cross_entropy.1} parent=5 // pred_check
      _
    $region10: #{label_smoothing_cross_entropy.1} parent=5 // pred_check_branch
      %99 = sbr.rel (%p96) target = $region12
    $region11: #{label_smoothing_cross_entropy.1} parent=5 // pred_region
      %s100 = ssub.s32 %s8, 1
    $region12: #{label_smoothing_cross_entropy.1} parent=5 // pred_fallthru
      _
    %p101 = scmp.lt.s32.totalorder %s8, 2
    // Predicated region
    $region13: #{label_smoothing_cross_entropy.1} parent=5 // pred_check
      %p102 = pneg %p101
    $region14: #{label_smoothing_cross_entropy.1} parent=5 // pred_check_branch
      %104 = sbr.rel (%p102) target = $region16
    $region15: #{label_smoothing_cross_entropy.1} parent=5 // pred_region
      // Predicated region
      $region17: #{label_smoothing_cross_entropy.1} parent=15 // pred_check
        %p105 = pneg %p28
      $region18: #{label_smoothing_cross_entropy.1} parent=15 // pred_check_branch
        %107 = sbr.rel (%p105) target = $region20
      $region19: #{label_smoothing_cross_entropy.1} parent=15 // pred_region
        %p108 = scmp.lt.s32.totalorder %s8, 1
        %s109 = scalar_select %p108, %s8, 1
        %s110 = smul.addr %s109, 8
        %s111 = scalar_lea.vmem %s0, %s110
      $region20: #{label_smoothing_cross_entropy.1} parent=15 // pred_fallthru
        _
      // Predicated region
      $region21: #{label_smoothing_cross_entropy.1} parent=15 // pred_check
        %p112 = pneg %p54
      $region22: #{label_smoothing_cross_entropy.1} parent=15 // pred_check_branch
        %114 = sbr.rel (%p112) target = $region24
      $region23: #{label_smoothing_cross_entropy.1} parent=15 // pred_region
        %p115 = scmp.lt.s32.totalorder %s8, 1
        %s116 = scalar_select %p115, %s8, 1
        %s117 = smul.addr %s116, 8
        %s118 = scalar_lea.vmem %s1, %s117
      $region24: #{label_smoothing_cross_entropy.1} parent=15 // pred_fallthru
        _
    $region16: #{label_smoothing_cross_entropy.1} parent=5 // pred_fallthru
      _
    %p119 = scmp.le.s32.totalorder 1, %s8
    %p120 = scmp.lt.s32.totalorder %s8, 3
    %p121 = pnand %p119, %p120
    %p122 = pneg %p121
    // Predicated region
    $region25: #{label_smoothing_cross_entropy.1} parent=5 // pred_check
      _
    $region26: #{label_smoothing_cross_entropy.1} parent=5 // pred_check_branch
      %124 = sbr.rel (%p121) target = $region28
    $region27: #{label_smoothing_cross_entropy.1} parent=5 // pred_region
      %s125 = ssub.s32 %s8, 1
      %p126 = scmp.lt.s32.totalorder %s13, 1
      %s127 = scalar_select %p126, %s13, 1
      %s128 = smul.addr %s127, 8
      %s129 = scalar_lea.vmem %s0, %s128
      %p130 = pneg %p34
      %p131 = pneg %p31
      %p132 = scmp.lt.s32.totalorder %s13, 1
      %s133 = scalar_select %p132, %s13, 1
      %s134 = smul.addr %s133, 8
      %s135 = scalar_lea.vmem %s1, %s134
      %p136 = pneg %p60
      %p137 = pneg %p57
      %p138 = pneg %p86
      %p139 = pneg %p83
      %p140 = scmp.lt.s32.totalorder %s13, 1
      %s141 = scalar_select %p140, %s13, 1
      %s142 = smul.addr %s141, 8
      %s143 = scalar_lea.vmem %s2, %s142
      %p144 = scmp.lt.s32.totalorder %s13, 1
      %s145 = scalar_select %p144, %s13, 1
      %s146 = smul.addr %s145, 8
      %s147 = scalar_lea.vmem %s0, %s146
      %p148 = scmp.lt.s32.totalorder %s13, 1
      %s149 = scalar_select %p148, %s13, 1
      %s150 = smul.addr %s149, 8
      %s151 = scalar_lea.vmem %s1, %s150
      %p152 = scmp.lt.s32.totalorder %s13, 1
      %s153 = scalar_select %p152, %s13, 1
      %s154 = smul.addr %s153, 8
      %s155 = scalar_lea.vmem %s2, %s154
      %v156 = vld [vmem:[%s147] sm:$0xff]
      %vm157 = vcmask 261120
      %v158 = vsel %vm157, %v156, -inf
      %159 = vmax.xlane.f32.xlu0 %v158
      %v160 = vpop.xlane.xlu0 %159
      %v161 = vsub.f32 %v156, %v160
      %v162 = vmul.f32 %v161, 1.442695
      %v163 = vpow.pop %v162
      %v164 = vsel %vm157, %v163, 0.0
      %165 = vadd.xlane.f32.xlu0 %v164
      %v166 = vpop.xlane.xlu0 %165
      %v167 = vlog2.pop %v166
      %v168 = vmul.f32 %v167, 0.6931472
      %v169 = vadd.f32 %v168, %v160
      %v170 = vsel %vm157, %v156, 0.0
      %171 = vadd.xlane.f32.xlu0 %v170
      %v172 = vpop.xlane.xlu0 %171
      %v173 = vlaneseq
      %v174 = vand.u32 %v173, 127
      %v175 = vld [vmem:[%s151] sm:$0xff]
      %176 = vset.pattern.permute.xlu0 0
      %177 = vperm.xlu0 %176, %v175
      %v178 = vpop.permute.xlu0 %177
      %vm179 = vcmp.eq.s32.totalorder %v174, %v178
      %v180 = vsel %vm179, %v156, 0.0
      %v181 = vsel %vm157, %v180, 0.0
      %182 = vadd.xlane.f32.xlu0 %v181
      %v183 = vpop.xlane.xlu0 %182
      %v184 = vmul.f32 %v172, 0.003125
      %v185 = vsub.f32 %v169, %v184
      %v186 = vmul.f32 %v183, 0.9
      %v187 = vsub.f32 %v185, %v186
      %vm188 = vcmask 7168
      %189 = vst.msk [vmem:[%s155] sm:$0xff] %vm188, %v187
      %p190 = scmp.lt.s32.totalorder %s13, 1
      %s191 = scalar_select %p190, %s13, 1
      %s192 = smul.addr %s191, 8
      %s193 = scalar_lea.vmem %s2, %s192
      // Predicated region
      $region29: #{label_smoothing_cross_entropy.1} parent=27 // pred_check
        %p194 = pneg %p83
      $region30: #{label_smoothing_cross_entropy.1} parent=27 // pred_check_branch
        %196 = sbr.rel (%p194) target = $region32
      $region31: #{label_smoothing_cross_entropy.1} parent=27 // pred_region
        _
      $region32: #{label_smoothing_cross_entropy.1} parent=27 // pred_fallthru
        _
    $region28: #{label_smoothing_cross_entropy.1} parent=5 // pred_fallthru
      _
    %p197 = scmp.le.s32.totalorder 2, %s8
    // Predicated region
    $region33: #{label_smoothing_cross_entropy.1} parent=5 // pred_check
      %p198 = pneg %p197
    $region34: #{label_smoothing_cross_entropy.1} parent=5 // pred_check_branch
      %200 = sbr.rel (%p198) target = $region36
    $region35: #{label_smoothing_cross_entropy.1} parent=5 // pred_region
      %s201 = ssub.s32 %s8, 2
      // Predicated region
      $region37: #{label_smoothing_cross_entropy.1} parent=35 // pred_check
        %p202 = pneg %p89
      $region38: #{label_smoothing_cross_entropy.1} parent=35 // pred_check_branch
        %204 = sbr.rel (%p202) target = $region40
      $region39: #{label_smoothing_cross_entropy.1} parent=35 // pred_region
        %p205 = scmp.lt.s32.totalorder %s14, 1
        %s206 = scalar_select %p205, %s14, 1
        %s207 = smul.addr %s206, 8
        %s208 = scalar_lea.vmem %s2, %s207
      $region40: #{label_smoothing_cross_entropy.1} parent=35 // pred_fallthru
        _
    $region36: #{label_smoothing_cross_entropy.1} parent=5 // pred_fallthru
      _
  $region6: #{label_smoothing_cross_entropy.1} parent=0 // loop_footer
    %s12 = sadd.s32 1, %s8
  $region7: #{label_smoothing_cross_entropy.1} parent=0 // loop_footer_branch
    %7 = sbr.rel target = $region3
  $region8: #{label_smoothing_cross_entropy.1} parent=0 // loop_exit
    _

</llo_original>
